<compile_context>
chip_gen: v6e
topology: v6e:2x2x1
jax: 0.10.0
libtpu: 0.0.40
codegen_flags: <defaults>
</compile_context>

<pallas_src>
import functools
import math

import jax
import jax.numpy as jnp
from jax.experimental import pallas as pl
from jax.experimental.pallas import tpu as pltpu


# ---------------------------------------------------------------------------
# Helpers / tiling constants
# ---------------------------------------------------------------------------
def _round_up(x, m):
    return ((x + m - 1) // m) * m


TM = 256                       # M tile
TK_MAX = 1024                  # max single-block K (reduction) size
VMEM_LIMIT = 32 * 1024 * 1024  # safely inside v7x's 64 MiB / v5e-v6e 128 MiB


# ---------------------------------------------------------------------------
# Pallas kernel: tiled matmul + bias + activation (+ optional fused residual).
# ---------------------------------------------------------------------------
def _mm_body(a_ref, b_ref, bias_ref, res_ref, o_ref, acc_ref, act):
    @pl.when(pl.program_id(2) == 0)
    def _init():
        acc_ref[...] = jnp.zeros_like(acc_ref)

    acc_ref[...] += jnp.dot(a_ref[...], b_ref[...],
                            preferred_element_type=jnp.float32)

    @pl.when(pl.program_id(2) == pl.num_programs(2) - 1)
    def _finalize():
        y = acc_ref[...] + bias_ref[...]            # (1, tn) broadcast, f32
        if act == "relu":
            y = jnp.maximum(y, 0.0)
        elif act == "leaky":                        # LeakyReLU(0.01)
            y = jnp.where(y >= 0.0, y, 0.01 * y)
        if res_ref is not None:                     # fused residual add
            y = y + res_ref[...].astype(jnp.float32)
        o_ref[...] = y.astype(o_ref.dtype)


def _mm_kernel(a_ref, b_ref, bias_ref, o_ref, acc_ref, *, act):
    _mm_body(a_ref, b_ref, bias_ref, None, o_ref, acc_ref, act)


def _mm_res_kernel(a_ref, b_ref, bias_ref, res_ref, o_ref, acc_ref, *, act):
    _mm_body(a_ref, b_ref, bias_ref, res_ref, o_ref, acc_ref, act)


def matmul_bias_act(A, Wp, bias, cout, act, res=None, out_dtype=jnp.bfloat16):
    """A:(M,Kp) bf16 @ Wp:(Kp,Np) bf16 + bias:(1,Np) f32 [+ res] -> (M,cout).

    M is handled with partial edge tiles (no M padding, no output-M slice).
    Callers produce A already padded to Kp (folded into the im2col gather);
    the pad here is only a rarely-used safety net."""
    M, K = A.shape
    Kp, Np = Wp.shape
    if K != Kp:                                     # safety net only
        A = jnp.pad(A, ((0, 0), (0, Kp - K)))

    tm = TM if M >= TM else _round_up(M, 16)
    tn = 256 if Np % 256 == 0 else 128
    if Kp <= TK_MAX:
        tk = Kp                                     # whole reduction in one step
    else:
        tk = next(t for t in (512, 384, 256, 128) if Kp % t == 0)

    grid = (pl.cdiv(M, tm), Np // tn, Kp // tk)

    in_specs = [
        pl.BlockSpec((tm, tk), lambda i, j, k: (i, k)),
        pl.BlockSpec((tk, tn), lambda i, j, k: (k, j)),
        pl.BlockSpec((1, tn), lambda i, j, k: (0, j)),
    ]
    args = [A, Wp, bias]
    if res is not None:
        if res.shape[1] != Np:                      # pad channels to Np (zeros)
            res = jnp.pad(res, ((0, 0), (0, Np - res.shape[1])))
        in_specs.append(pl.BlockSpec((tm, tn), lambda i, j, k: (i, j)))
        args.append(res)
        kernel = functools.partial(_mm_res_kernel, act=act)
    else:
        kernel = functools.partial(_mm_kernel, act=act)

    out = pl.pallas_call(
        kernel,
        out_shape=jax.ShapeDtypeStruct((M, Np), out_dtype),
        grid_spec=pltpu.PrefetchScalarGridSpec(
            num_scalar_prefetch=0,
            grid=grid,
            in_specs=in_specs,
            out_specs=pl.BlockSpec((tm, tn), lambda i, j, k: (i, j)),
            scratch_shapes=[pltpu.VMEM((tm, tn), jnp.float32)],
        ),
        compiler_params=pltpu.CompilerParams(
            dimension_semantics=("parallel", "parallel", "arbitrary"),
            vmem_limit_bytes=VMEM_LIMIT,
        ),
    )(*args)
    return out if Np == cout else out[:, :cout]


# ---------------------------------------------------------------------------
# Conv2d / ConvTranspose2d (NHWC) built on the Pallas matmul.
# ---------------------------------------------------------------------------
def conv2d(x, lp, *, stride=1, padding=1, act="none", res=None,
           out_dtype=jnp.bfloat16):
    """x: NHWC.  Weight rows ordered (kh, kw, cin) to match im2col below.
    `res` (NHWC, same spatial dims / cout channels) is fused into the epilogue."""
    k = lp["ksize"]
    xb = x.astype(jnp.bfloat16)
    xp = jnp.pad(xb, ((0, 0), (padding, padding), (padding, padding), (0, 0)))
    B, Hp, Wp_, Cin = xp.shape
    Ho = (Hp - k) // stride + 1
    Wo = (Wp_ - k) // stride + 1
    # TODO(synk): fuse the patch gather into the Pallas kernel (pl.ANY + manual
    # DMA) to avoid materializing the k*k-inflated im2col matrix in HBM.
    cols = [xp[:, i:i + stride * Ho:stride, j:j + stride * Wo:stride, :]
            for i in range(k) for j in range(k)]
    K, Kp = k * k * Cin, lp["kdim"]
    if Kp > K:   # fold K->x128 padding into the gather (no extra pad pass)
        cols.append(jnp.zeros((B, Ho, Wo, Kp - K), jnp.bfloat16))
    patches = jnp.concatenate(cols, axis=-1).reshape(B * Ho * Wo, Kp)
    res2d = res.reshape(B * Ho * Wo, lp["cout"]) if res is not None else None
    out = matmul_bias_act(patches, lp["w"], lp["b"], lp["cout"], act,
                          res=res2d, out_dtype=out_dtype)
    return out.reshape(B, Ho, Wo, lp["cout"])


def conv_transpose2d(x, lp, *, output_padding, act, out_dtype=jnp.bfloat16):
    """nn.ConvTranspose2d(k=2, s=2, padding=1, output_padding) via sub-pixel
    (phase) decomposition: out[2a+dy, 2b+dx] = x_pad[a+dy, b+dx] @ W[:,:,1-dy,1-dx],
    i.e. each output phase is a pointwise matmul — no zero-dilated input."""
    B, H, W, Cin = x.shape
    Kp = lp["kdim"]
    xb = x.astype(jnp.bfloat16)
    # single pad op: +1 bottom/right spatially, channels up to Kp (zeros)
    xp = jnp.pad(xb, ((0, 0), (0, 1), (0, 1), (0, Kp - Cin)))
    cout = lp["cout"]
    phases = []
    for idx, (dy, dx) in enumerate(((0, 0), (0, 1), (1, 0), (1, 1))):
        a = xp[:, dy:dy + H, dx:dx + W, :].reshape(B * H * W, Kp)
        y = matmul_bias_act(a, lp["taps"][idx], lp["b"], cout, act,
                            out_dtype=out_dtype)
        phases.append(y.reshape(B, H, W, cout))
    z = jnp.stack(phases, axis=0).reshape(2, 2, B, H, W, cout)
    z = jnp.transpose(z, (2, 3, 0, 4, 1, 5)).reshape(B, 2 * H, 2 * W, cout)
    oh = 2 * H - 2 + output_padding                 # (H-1)*2 - 2*1 + 1 + op + 1
    ow = 2 * W - 2 + output_padding
    return z[:, :oh, :ow, :]


# ---------------------------------------------------------------------------
# Deterministic parameter construction + packing (done once, ahead of time).
# ---------------------------------------------------------------------------
class ParamMaker:
    def __init__(self, key):
        self.key = key

    def _uniform(self, shape, bound):
        self.key, k = jax.random.split(self.key)
        return jax.random.uniform(k, shape, jnp.float32, -bound, bound)

    def conv(self, in_c, out_c, k):
        bound = 1.0 / math.sqrt(in_c * k * k)
        W = self._uniform((out_c, in_c, k, k), bound)       # torch Conv2d layout
        b = self._uniform((out_c,), bound)
        K = k * k * in_c
        Kp, Np = _round_up(K, 128), _round_up(out_c, 128)
        Wm = jnp.transpose(W, (2, 3, 1, 0)).reshape(K, out_c)   # rows (kh,kw,cin)
        Wm = jnp.pad(Wm, ((0, Kp - K), (0, Np - out_c))).astype(jnp.bfloat16)
        bp = jnp.pad(b, (0, Np - out_c)).reshape(1, Np)
        return {"w": Wm, "b": bp, "ksize": k, "cout": out_c, "kdim": Kp}

    def convT(self, in_c, out_c, k=2):
        assert k == 2
        bound = 1.0 / math.sqrt(out_c * k * k)
        W = self._uniform((in_c, out_c, k, k), bound)   # torch ConvTranspose2d layout
        b = self._uniform((out_c,), bound)
        Kp, Np = _round_up(in_c, 128), _round_up(out_c, 128)
        taps = []
        for dy in (0, 1):
            for dx in (0, 1):
                t = W[:, :, 1 - dy, 1 - dx]             # (Cin, Cout) tap for phase (dy,dx)
                taps.append(jnp.pad(t, ((0, Kp - in_c), (0, Np - out_c)))
                            .astype(jnp.bfloat16))
        bp = jnp.pad(b, (0, Np - out_c)).reshape(1, Np)
        return {"taps": taps, "b": bp, "cout": out_c, "kdim": Kp}


def make_fphinet_params(pm, in_ch, nf):
    p = {}
    p["enc_mv1"] = pm.conv(nf, in_ch, 3)
    p["enc_mv2"] = pm.conv(2 * nf, nf, 3)
    p["enc_mv3"] = pm.conv(2 * nf, 2 * nf, 3)
    p["enc_mv4"] = pm.conv(4 * nf, 2 * nf, 3)
    p["enc_tg1_"] = pm.conv(in_ch, nf, 3)
    p["enc_tg2_"] = pm.conv(nf, 2 * nf, 3)
    p["enc_tg3_"] = pm.conv(2 * nf, 2 * nf, 3)
    p["enc_m0"] = pm.conv(2 * in_ch, 2 * nf, 3)
    p["enc_m1"] = pm.conv(2 * nf, 4 * nf, 3)
    p["enc_m2"] = pm.conv(4 * nf, 8 * nf, 2)
    p["enc_m3"] = pm.conv(8 * nf, 8 * nf, 3)
    p["enc_m4"] = pm.conv(8 * nf, 8 * nf, 3)
    p["enc_m5"] = pm.conv(8 * nf, 16 * nf, 2)
    p["enc_m6"] = pm.conv(16 * nf, 16 * nf, 3)
    p["enc_m7"] = pm.conv(16 * nf, 16 * nf, 3)
    p["enc_m8"] = pm.conv(16 * nf, 32 * nf, 2)
    p["enc_m9"] = pm.conv(32 * nf, 32 * nf, 3)
    p["dec_m9"] = pm.convT(64 * nf, 32 * nf, 2)
    p["dec_m8"] = pm.conv(64 * nf, 32 * nf, 3)
    p["dec_m7"] = pm.conv(32 * nf, 32 * nf, 3)
    p["dec_m6"] = pm.convT(32 * nf, 16 * nf, 2)
    p["dec_m5"] = pm.conv(32 * nf, 8 * nf, 3)
    p["dec_m4"] = pm.conv(8 * nf, 8 * nf, 3)
    p["dec_m3"] = pm.convT(8 * nf, 8 * nf, 2)
    p["dec_m2"] = pm.conv(16 * nf, 4 * nf, 3)
    p["enc_tg1"] = pm.conv(2 * nf, 4 * nf, 3)
    p["enc_tg2"] = pm.conv(4 * nf, 8 * nf, 2)
    p["enc_tg3"] = pm.conv(8 * nf, 8 * nf, 3)
    p["enc_tg4"] = pm.conv(8 * nf, 8 * nf, 3)
    p["enc_tg5"] = pm.conv(8 * nf, 16 * nf, 2)
    p["enc_tg6"] = pm.conv(16 * nf, 16 * nf, 3)
    p["enc_tg7"] = pm.conv(16 * nf, 16 * nf, 3)
    p["enc_tg8"] = pm.conv(16 * nf, 32 * nf, 2)
    # conv_enc_tg9 is declared in the torch module but never used in forward.
    return p


# ---------------------------------------------------------------------------
# fphinet forward (mirrors the PyTorch forward line-by-line; NHWC internally).
# Residual "+ x" terms are fused into the producing conv's Pallas epilogue.
# ---------------------------------------------------------------------------
def fphinet_forward(p, x):
    m0_in, tg_in = x
    S = tg_in.shape[2]
    m0 = m0_in.reshape(-1, 2, S, S)                 # torch: m0.view(-1, 2, 192, 192)
    m0 = jnp.transpose(m0, (0, 2, 3, 1))            # NHWC
    tg = jnp.transpose(tg_in, (0, 2, 3, 1))

    tg = conv2d(tg, p["enc_tg1_"], act="relu")
    tg = conv2d(tg, p["enc_tg2_"], act="relu")
    tg = conv2d(tg, p["enc_tg3_"], act="relu", res=tg)
    tg1 = conv2d(tg, p["enc_tg1"], act="relu")
    tg2 = conv2d(tg1, p["enc_tg2"], stride=2, padding=1, act="relu")
    tg3 = conv2d(tg2, p["enc_tg3"], act="relu", res=tg2)
    tg4 = conv2d(tg3, p["enc_tg4"], act="relu", res=tg3)
    tg5 = conv2d(tg4, p["enc_tg5"], stride=2, padding=1, act="relu")
    tg6 = conv2d(tg5, p["enc_tg6"], act="relu", res=tg5)
    tg7 = conv2d(tg6, p["enc_tg7"], act="relu", res=tg6)
    tg8 = conv2d(tg7, p["enc_tg8"], stride=2, padding=1, act="relu")
    tg9 = conv2d(tg8, p["enc_m9"], act="relu", res=tg8)  # torch shares conv_enc_m9

    m00 = conv2d(m0, p["enc_m0"], act="relu")
    m1 = conv2d(m00, p["enc_m1"], act="relu")
    m2 = conv2d(m1, p["enc_m2"], stride=2, padding=1, act="relu")
    m3 = conv2d(m2, p["enc_m3"], act="relu", res=m2)
    m4 = conv2d(m3, p["enc_m4"], act="relu", res=m3)
    m5 = conv2d(m4, p["enc_m5"], stride=2, padding=1, act="relu")
    m6 = conv2d(m5, p["enc_m6"], act="relu", res=m5)
    m7 = conv2d(m6, p["enc_m7"], act="relu", res=m6)
    m8 = conv2d(m7, p["enc_m8"], stride=2, padding=1, act="relu")
    m9 = conv2d(m8, p["enc_m9"], act="relu", res=m8)

    m9c = jnp.concatenate([m9, tg9], axis=-1)
    up9 = conv_transpose2d(m9c, p["dec_m9"], output_padding=1, act="leaky")
    m9_ = jnp.concatenate([up9, m7, tg7], axis=-1)
    m8_ = conv2d(m9_, p["dec_m8"], act="leaky")
    m7_ = conv2d(m8_, p["dec_m7"], act="leaky", res=m8_)
    up6 = conv_transpose2d(m7_, p["dec_m6"], output_padding=1, act="leaky")
    m6_ = jnp.concatenate([up6, m4, tg4], axis=-1)
    m5_ = conv2d(m6_, p["dec_m5"], act="leaky")
    m4_ = conv2d(m5_, p["dec_m4"], act="leaky", res=m5_)
    up3 = conv_transpose2d(m4_, p["dec_m3"], output_padding=0, act="leaky")
    m3_ = jnp.concatenate([up3, m1, tg1], axis=-1)
    m2_ = conv2d(m3_, p["dec_m2"], act="none")

    mv = conv2d(m2_, p["enc_mv4"], act="relu")
    mv = conv2d(mv, p["enc_mv3"], act="relu", res=mv)
    mv = conv2d(mv, p["enc_mv2"], act="relu")
    mv = conv2d(mv, p["enc_mv1"], act="none", out_dtype=jnp.float32)
    return jnp.transpose(mv, (0, 3, 1, 2))          # back to NCHW


# ---------------------------------------------------------------------------
# Small numerical self-check of the Pallas matmul path (bf16 tolerance),
# including the fused residual branch.
# ---------------------------------------------------------------------------
def _selfcheck():
    ka, kw, kb, kr = jax.random.split(jax.random.PRNGKey(42), 4)
    M, K, N = 200, 288, 96
    Kp, Np = _round_up(K, 128), _round_up(N, 128)
    A = 0.1 * jax.random.normal(ka, (M, K), jnp.float32)
    W = 0.1 * jax.random.normal(kw, (K, N), jnp.float32)
    b = 0.1 * jax.random.normal(kb, (N,), jnp.float32)
    R = 0.1 * jax.random.normal(kr, (M, N), jnp.float32)
    Ap = jnp.pad(A, ((0, 0), (0, Kp - K))).astype(jnp.bfloat16)
    Wp = jnp.pad(W, ((0, Kp - K), (0, Np - N))).astype(jnp.bfloat16)
    bp = jnp.pad(b, (0, Np - N)).reshape(1, Np)
    got = matmul_bias_act(Ap, Wp, bp, N, "leaky",
                          res=R.astype(jnp.bfloat16), out_dtype=jnp.float32)
    ref = A @ W + b
    ref = jnp.where(ref >= 0, ref, 0.01 * ref) + R
    err = float(jnp.max(jnp.abs(got - ref)))
    assert err < 5e-2, f"matmul self-check failed: max err {err}"


# ---------------------------------------------------------------------------
if __name__ == "__main__":
    # use_dropout / nn.Dropout and conv_enc_tg9 are declared but never used in
    # the torch forward, so they are omitted here.
    in_channels = 1      # fphinet requires 2*in_channels == 2 channels after m0.view(-1,2,S,S)
    n_features = 4
    B = 2
    S = 16               # torch hardcodes 192; any size that round-trips the U-Net works

    pm = ParamMaker(jax.random.PRNGKey(0))
    params = make_fphinet_params(pm, in_channels, n_features)

    _selfcheck()

    k0, k1 = jax.random.split(jax.random.PRNGKey(0))
    m0 = jax.random.normal(k0, (B, 2, S, S), jnp.float32)
    tg = jax.random.normal(k1, (B, in_channels, S, S), jnp.float32)

    fwd = jax.jit(functools.partial(fphinet_forward, params))
    mv = fwd((m0, tg))
    jax.block_until_ready(mv)

    assert mv.shape == (B, in_channels, S, S), mv.shape
    assert bool(jnp.all(jnp.isfinite(mv))), "non-finite output"
    print("KERNEL_OK")
</pallas_src>

<mosaic_0001>
module attributes {stable_mosaic.version = 11 : i64} {
  func.func @_mm_res_kernel(%arg0: i32, %arg1: i32, %arg2: i32, %arg3: memref<208x384xbf16, #tpu.memory_space<vmem>>, %arg4: memref<384x128xbf16, #tpu.memory_space<vmem>>, %arg5: memref<1x128xf32, #tpu.memory_space<vmem>>, %arg6: memref<208x128xbf16, #tpu.memory_space<vmem>>, %arg7: memref<208x128xf32, #tpu.memory_space<vmem>>, %arg8: memref<208x128xf32, #tpu.memory_space<vmem>>) attributes {dimension_semantics = [#tpu.dimension_semantics<parallel>, #tpu.dimension_semantics<parallel>, #tpu.dimension_semantics<arbitrary>], iteration_bounds = array<i64: 1, 1, 1>, scalar_prefetch = 0 : i64, scratch_operands = 1 : i64, tpu.core_type = #tpu.core_type<tc>, window_params = [{transform_indices = @transform_0, window_bounds = array<i64: 208, 384>}, {transform_indices = @transform_1, window_bounds = array<i64: 384, 128>}, {transform_indices = @transform_2, window_bounds = array<i64: 1, 128>}, {transform_indices = @transform_3, window_bounds = array<i64: 208, 128>}, {transform_indices = @transform_4, window_bounds = array<i64: 208, 128>}]} {
    %c0_i32 = arith.constant 0 : i32
    %0 = arith.cmpi eq, %arg2, %c0_i32 : i32
    %1 = arith.extui %0 : i1 to i32
    %c0_i32_0 = arith.constant 0 : i32
    %2 = arith.cmpi ne, %1, %c0_i32_0 : i32
    scf.if %2 {
      %cst_10 = arith.constant 0.000000e+00 : f32
      %12 = vector.broadcast %cst_10 : f32 to vector<208x128xf32>
      %c0_11 = arith.constant 0 : index
      %c0_12 = arith.constant 0 : index
      %13 = vector.load %arg8[%c0_11, %c0_12] : memref<208x128xf32, #tpu.memory_space<vmem>>, vector<208x128xf32>
      tpu.vector_store %arg8[%c0_11, %c0_12], %12 {strides = array<i32>} : memref<208x128xf32, #tpu.memory_space<vmem>>, vector<208x128xf32>,
    } else {
    }
    %c0 = arith.constant 0 : index
    %c0_1 = arith.constant 0 : index
    %3 = vector.load %arg8[%c0, %c0_1] : memref<208x128xf32, #tpu.memory_space<vmem>>, vector<208x128xf32>
    %c0_2 = arith.constant 0 : index
    %c0_3 = arith.constant 0 : index
    %4 = vector.load %arg3[%c0_2, %c0_3] : memref<208x384xbf16, #tpu.memory_space<vmem>>, vector<208x384xbf16>
    %c0_4 = arith.constant 0 : index
    %c0_5 = arith.constant 0 : index
    %5 = vector.load %arg4[%c0_4, %c0_5] : memref<384x128xbf16, #tpu.memory_space<vmem>>, vector<384x128xbf16>
    %cst = arith.constant dense<0.000000e+00> : vector<208x128xf32>
    %6 = tpu.matmul %4, %5, %cst {dimension_numbers = #tpu.dot_dimension_numbers<[1], [0], [0], [1], [0, 0, 1, 1], [], []>} : vector<208x384xbf16>, vector<384x128xbf16>, vector<208x128xf32> -> vector<208x128xf32>
    %7 = arith.addf %3, %6 : vector<208x128xf32>
    %c0_6 = arith.constant 0 : index
    %c0_7 = arith.constant 0 : index
    %8 = vector.load %arg8[%c0_6, %c0_7] : memref<208x128xf32, #tpu.memory_space<vmem>>, vector<208x128xf32>
    tpu.vector_store %arg8[%c0_6, %c0_7], %7 {strides = array<i32>} : memref<208x128xf32, #tpu.memory_space<vmem>>, vector<208x128xf32>,
    %c0_i32_8 = arith.constant 0 : i32
    %9 = arith.cmpi eq, %arg2, %c0_i32_8 : i32
    %10 = arith.extui %9 : i1 to i32
    %c0_i32_9 = arith.constant 0 : i32
    %11 = arith.cmpi ne, %10, %c0_i32_9 : i32
    scf.if %11 {
      %c0_10 = arith.constant 0 : index
      %c0_11 = arith.constant 0 : index
      %12 = vector.load %arg8[%c0_10, %c0_11] : memref<208x128xf32, #tpu.memory_space<vmem>>, vector<208x128xf32>
      %c0_12 = arith.constant 0 : index
      %c0_13 = arith.constant 0 : index
      %13 = vector.load %arg5[%c0_12, %c0_13] : memref<1x128xf32, #tpu.memory_space<vmem>>, vector<1x128xf32>
      %14 = vector.broadcast %13 : vector<1x128xf32> to vector<208x128xf32>
      %15 = arith.addf %12, %14 : vector<208x128xf32>
      %cst_14 = arith.constant 0.000000e+00 : f32
      %16 = vector.broadcast %cst_14 : f32 to vector<208x128xf32>
      %17 = arith.cmpf oge, %15, %16 : vector<208x128xf32>
      %cst_15 = arith.constant 0.00999999977 : f32
      %18 = vector.broadcast %cst_15 : f32 to vector<208x128xf32>
      %19 = arith.mulf %18, %15 : vector<208x128xf32>
      %20 = arith.select %17, %15, %19 : vector<208x128xi1>, vector<208x128xf32>
      %c0_16 = arith.constant 0 : index
      %c0_17 = arith.constant 0 : index
      %21 = vector.load %arg6[%c0_16, %c0_17] : memref<208x128xbf16, #tpu.memory_space<vmem>>, vector<208x128xbf16>
      %22 = arith.extf %21 : vector<208x128xbf16> to vector<208x128xf32>
      %23 = arith.addf %20, %22 : vector<208x128xf32>
      %c0_18 = arith.constant 0 : index
      %c0_19 = arith.constant 0 : index
      %24 = vector.load %arg7[%c0_18, %c0_19] : memref<208x128xf32, #tpu.memory_space<vmem>>, vector<208x128xf32>
      tpu.vector_store %arg7[%c0_18, %c0_19], %23 {strides = array<i32>} : memref<208x128xf32, #tpu.memory_space<vmem>>, vector<208x128xf32>,
    } else {
    }
    return
  }
  func.func @transform_0(%arg0: i32, %arg1: i32, %arg2: i32) -> (i32, i32) {
    %c0_i32 = arith.constant 0 : i32
    return %arg0, %arg2 : i32, i32
  }
  func.func @transform_1(%arg0: i32, %arg1: i32, %arg2: i32) -> (i32, i32) {
    %c0_i32 = arith.constant 0 : i32
    return %arg2, %arg1 : i32, i32
  }
  func.func @transform_2(%arg0: i32, %arg1: i32, %arg2: i32) -> (i32, i32) {
    %c0_i32 = arith.constant 0 : i32
    %c0_i32_0 = arith.constant 0 : i32
    return %c0_i32, %arg1 : i32, i32
  }
  func.func @transform_3(%arg0: i32, %arg1: i32, %arg2: i32) -> (i32, i32) {
    %c0_i32 = arith.constant 0 : i32
    return %arg0, %arg1 : i32, i32
  }
  func.func @transform_4(%arg0: i32, %arg1: i32, %arg2: i32) -> (i32, i32) {
    %c0_i32 = arith.constant 0 : i32
    return %arg0, %arg1 : i32, i32
  }
}

</mosaic_0001>

<llo_original>
// kernel: tpu_custom_call.1
$region0: #{tpu_custom_call.1}
  #allocation0 [shape = 'u32[]', space=smem, size = 0x4, offset = 0x4, fixed_abs, tag = 'smem constant byte address 0x4 - core index']
  #allocation1 [shape = 'u32[144,128]{1,0:T(1,128)}', space=vmem, size = 0x12000, scoped, tag = 'internal scratch']
  #allocation2 [shape = 'f32[208,128]{1,0:T(8,128)}', space=vmem, size = 0x1a000, scoped, tag = 'scratch operand']
  %s0 = inlined_call_operand.hbm [shape: bf16[200,384], index: 0, kind: input, shape index: {}]
  %s1 = inlined_call_operand.hbm [shape: bf16[384,128], index: 1, kind: input, shape index: {}]
  %s2 = inlined_call_operand.vmem [shape: f32[1,128], index: 2, kind: input, shape index: {}]
  %s3 = inlined_call_operand.hbm [shape: bf16[200,128], index: 3, kind: input, shape index: {}]
  %s4 = inlined_call_operand.hbm [shape: f32[200,128], index: 4, kind: output, shape index: {}]
  %s5 = sld [smem:[#allocation0]]
  $region46: #{tpu_custom_call.1} parent=0
    _
  %s7 = ssub.s32 1, %s5
  %s8 = scalar_select 0, %s7, %s5
  $region1: #{tpu_custom_call.1} parent=0
    #allocation3 [shape = 'u8[159744]{0}', space=vmem, size = 0x27000, scoped, tag = 'input window, operand 0, single buffered']
    #allocation4 [shape = 's32[1]{0}', space=sflag, size = 0x4, scoped, tag = 'scoped memory for tpu_custom_call.1']
    #allocation5 [shape = 's32[1]{0}', space=sflag, size = 0x4, scoped, tag = 'scoped memory for tpu_custom_call.1']
    #allocation6 [shape = 'u8[98304]{0}', space=vmem, size = 0x18000, scoped, tag = 'input window, operand 1, single buffered']
    #allocation7 [shape = 's32[1]{0}', space=sflag, size = 0x4, scoped, tag = 'scoped memory for tpu_custom_call.1']
    #allocation8 [shape = 'u8[53248]{0}', space=vmem, size = 0xd000, scoped, tag = 'input window, operand 3, single buffered']
    #allocation9 [shape = 'u8[106496]{0}', space=vmem, size = 0x1a000, scoped, tag = 'output window, operand 0, single buffered']
    %9 = vsyncpa [#allocation4], 0
    %10 = vsyncpa [#allocation7], 0
    %11 = vsyncpa [#allocation5], 0
    // Predicated region
    $region2: #{tpu_custom_call.1} parent=1 // pred_check
      _
    $region3: #{tpu_custom_call.1} parent=1 // pred_check_branch
      %13 = sbr.rel (0) target = $region5
    $region4: #{tpu_custom_call.1} parent=1 // pred_region
      %s15 = ssub.s32 4992, 4800
      %16 = vsyncadd [#allocation4], %s15
      %s17 = sshll.u32 [#allocation3], 4
      %s18 = int_to_ptr.vmem [resolvable:$true] %s17
      %23 = dma.hbm_to_vmem [thread:$0]  %s0, 4800, %s18, [#allocation4], 192, 192, 12
    $region5: #{tpu_custom_call.1} parent=1 // pred_fallthru
      _
    // Predicated region
    $region6: #{tpu_custom_call.1} parent=1 // pred_check
      _
    $region7: #{tpu_custom_call.1} parent=1 // pred_check_branch
      %25 = sbr.rel (0) target = $region9
    $region8: #{tpu_custom_call.1} parent=1 // pred_region
      %s27 = ssub.s32 3072, 3072
      %28 = vsyncadd [#allocation7], %s27
      %s29 = sshll.u32 [#allocation6], 4
      %s30 = int_to_ptr.vmem [resolvable:$true] %s29
      %35 = dma.hbm_to_vmem [thread:$0]  %s1, 3072, %s30, [#allocation7], 64, 64, 4
    $region9: #{tpu_custom_call.1} parent=1 // pred_fallthru
      _
    // Predicated region
    $region10: #{tpu_custom_call.1} parent=1 // pred_check
      _
    $region11: #{tpu_custom_call.1} parent=1 // pred_check_branch
      %37 = sbr.rel (0) target = $region13
    $region12: #{tpu_custom_call.1} parent=1 // pred_region
      _
    $region13: #{tpu_custom_call.1} parent=1 // pred_fallthru
      _
    // Predicated region
    $region14: #{tpu_custom_call.1} parent=1 // pred_check
      _
    $region15: #{tpu_custom_call.1} parent=1 // pred_check_branch
      %39 = sbr.rel (0) target = $region17
    $region16: #{tpu_custom_call.1} parent=1 // pred_region
      %s41 = ssub.s32 1664, 1600
      %42 = vsyncadd [#allocation7], %s41
      %s43 = sshll.u32 [#allocation8], 4
      %s44 = int_to_ptr.vmem [resolvable:$true] %s43
      %49 = dma.hbm_to_vmem [thread:$0]  %s3, 1600, %s44, [#allocation7], 64, 64, 4
    $region17: #{tpu_custom_call.1} parent=1 // pred_fallthru
      _
    // Predicated region
    $region18: #{tpu_custom_call.1} parent=1 // pred_check
      _
    $region19: #{tpu_custom_call.1} parent=1 // pred_check_branch
      %51 = sbr.rel (0) target = $region21
    $region20: #{tpu_custom_call.1} parent=1 // pred_region
      %52 = dma.done [#allocation4], 4992
    $region21: #{tpu_custom_call.1} parent=1 // pred_fallthru
      _
    // Predicated region
    $region22: #{tpu_custom_call.1} parent=1 // pred_check
      _
    $region23: #{tpu_custom_call.1} parent=1 // pred_check_branch
      %54 = sbr.rel (0) target = $region25
    $region24: #{tpu_custom_call.1} parent=1 // pred_region
      %55 = dma.done [#allocation7], 3072
    $region25: #{tpu_custom_call.1} parent=1 // pred_fallthru
      _
    // Predicated region
    $region26: #{tpu_custom_call.1} parent=1 // pred_check
      _
    $region27: #{tpu_custom_call.1} parent=1 // pred_check_branch
      %57 = sbr.rel (0) target = $region29
    $region28: #{tpu_custom_call.1} parent=1 // pred_region
      %58 = dma.done [#allocation7], 1664
    $region29: #{tpu_custom_call.1} parent=1 // pred_fallthru
      _
    %p60 = scmp.eq.s32.totalorder 0, 0
    // Predicated region
    $region30: #{tpu_custom_call.1} parent=1 // pred_check
      %p61 = pneg %p60
    $region31: #{tpu_custom_call.1} parent=1 // pred_check_branch
      %63 = sbr.rel (%p61) target = $region33
    $region32: #{tpu_custom_call.1} parent=1 // pred_region
      %64 = vst [vmem:[#allocation2] sm:$0xff] 0.0
      %65 = vst [vmem:[#allocation2 + $0x8] sm:$0xff] 0.0
      %66 = vst [vmem:[#allocation2 + $0x10] sm:$0xff] 0.0
      %67 = vst [vmem:[#allocation2 + $0x18] sm:$0xff] 0.0
      %68 = vst [vmem:[#allocation2 + $0x20] sm:$0xff] 0.0
      %69 = vst [vmem:[#allocation2 + $0x28] sm:$0xff] 0.0
      %70 = vst [vmem:[#allocation2 + $0x30] sm:$0xff] 0.0
      %71 = vst [vmem:[#allocation2 + $0x38] sm:$0xff] 0.0
      %72 = vst [vmem:[#allocation2 + $0x40] sm:$0xff] 0.0
      %73 = vst [vmem:[#allocation2 + $0x48] sm:$0xff] 0.0
      %74 = vst [vmem:[#allocation2 + $0x50] sm:$0xff] 0.0
      %75 = vst [vmem:[#allocation2 + $0x58] sm:$0xff] 0.0
      %76 = vst [vmem:[#allocation2 + $0x60] sm:$0xff] 0.0
      %77 = vst [vmem:[#allocation2 + $0x68] sm:$0xff] 0.0
      %78 = vst [vmem:[#allocation2 + $0x70] sm:$0xff] 0.0
      %79 = vst [vmem:[#allocation2 + $0x78] sm:$0xff] 0.0
      %80 = vst [vmem:[#allocation2 + $0x80] sm:$0xff] 0.0
      %81 = vst [vmem:[#allocation2 + $0x88] sm:$0xff] 0.0
      %82 = vst [vmem:[#allocation2 + $0x90] sm:$0xff] 0.0
      %83 = vst [vmem:[#allocation2 + $0x98] sm:$0xff] 0.0
      %84 = vst [vmem:[#allocation2 + $0xa0] sm:$0xff] 0.0
      %85 = vst [vmem:[#allocation2 + $0xa8] sm:$0xff] 0.0
      %86 = vst [vmem:[#allocation2 + $0xb0] sm:$0xff] 0.0
      %87 = vst [vmem:[#allocation2 + $0xb8] sm:$0xff] 0.0
      %88 = vst [vmem:[#allocation2 + $0xc0] sm:$0xff] 0.0
      %89 = vst [vmem:[#allocation2 + $0xc8] sm:$0xff] 0.0
    $region33: #{tpu_custom_call.1} parent=1 // pred_fallthru
      _
    %v90 = vld [vmem:[#allocation2] sm:$0xff]
    %v91 = vld [vmem:[#allocation2 + $0x8] sm:$0xff]
    %v92 = vld [vmem:[#allocation2 + $0x10] sm:$0xff]
    %v93 = vld [vmem:[#allocation2 + $0x18] sm:$0xff]
    %v94 = vld [vmem:[#allocation2 + $0x20] sm:$0xff]
    %v95 = vld [vmem:[#allocation2 + $0x28] sm:$0xff]
    %v96 = vld [vmem:[#allocation2 + $0x30] sm:$0xff]
    %v97 = vld [vmem:[#allocation2 + $0x38] sm:$0xff]
    %v98 = vld [vmem:[#allocation2 + $0x40] sm:$0xff]
    %v99 = vld [vmem:[#allocation2 + $0x48] sm:$0xff]
    %v100 = vld [vmem:[#allocation2 + $0x50] sm:$0xff]
    %v101 = vld [vmem:[#allocation2 + $0x58] sm:$0xff]
    %v102 = vld [vmem:[#allocation2 + $0x60] sm:$0xff]
    %v103 = vld [vmem:[#allocation2 + $0x68] sm:$0xff]
    %v104 = vld [vmem:[#allocation2 + $0x70] sm:$0xff]
    %v105 = vld [vmem:[#allocation2 + $0x78] sm:$0xff]
    %v106 = vld [vmem:[#allocation2 + $0x80] sm:$0xff]
    %v107 = vld [vmem:[#allocation2 + $0x88] sm:$0xff]
    %v108 = vld [vmem:[#allocation2 + $0x90] sm:$0xff]
    %v109 = vld [vmem:[#allocation2 + $0x98] sm:$0xff]
    %v110 = vld [vmem:[#allocation2 + $0xa0] sm:$0xff]
    %v111 = vld [vmem:[#allocation2 + $0xa8] sm:$0xff]
    %v112 = vld [vmem:[#allocation2 + $0xb0] sm:$0xff]
    %v113 = vld [vmem:[#allocation2 + $0xb8] sm:$0xff]
    %v114 = vld [vmem:[#allocation2 + $0xc0] sm:$0xff]
    %v115 = vld [vmem:[#allocation2 + $0xc8] sm:$0xff]
    %v116 = vld [vmem:[#allocation3] sm:$0xff]
    %v117 = vld [vmem:[#allocation3 + $0x8] sm:$0xf]
    %v118 = vld [vmem:[#allocation3 + $0xc] sm:$0xff]
    %v119 = vld [vmem:[#allocation3 + $0x14] sm:$0xf]
    %v120 = vld [vmem:[#allocation3 + $0x18] sm:$0xff]
    %v121 = vld [vmem:[#allocation3 + $0x20] sm:$0xf]
    %v122 = vld [vmem:[#allocation3 + $0x24] sm:$0xff]
    %v123 = vld [vmem:[#allocation3 + $0x2c] sm:$0xf]
    %v124 = vld [vmem:[#allocation3 + $0x30] sm:$0xff]
    %v125 = vld [vmem:[#allocation3 + $0x38] sm:$0xf]
    %v126 = vld [vmem:[#allocation3 + $0x3c] sm:$0xff]
    %v127 = vld [vmem:[#allocation3 + $0x44] sm:$0xf]
    %v128 = vld [vmem:[#allocation3 + $0x48] sm:$0xff]
    %v129 = vld [vmem:[#allocation3 + $0x50] sm:$0xf]
    %v130 = vld [vmem:[#allocation3 + $0x54] sm:$0xff]
    %v131 = vld [vmem:[#allocation3 + $0x5c] sm:$0xf]
    %v132 = vld [vmem:[#allocation3 + $0x60] sm:$0xff]
    %v133 = vld [vmem:[#allocation3 + $0x68] sm:$0xf]
    %v134 = vld [vmem:[#allocation3 + $0x6c] sm:$0xff]
    %v135 = vld [vmem:[#allocation3 + $0x74] sm:$0xf]
    %v136 = vld [vmem:[#allocation3 + $0x78] sm:$0xff]
    %v137 = vld [vmem:[#allocation3 + $0x80] sm:$0xf]
    %v138 = vld [vmem:[#allocation3 + $0x84] sm:$0xff]
    %v139 = vld [vmem:[#allocation3 + $0x8c] sm:$0xf]
    %v140 = vld [vmem:[#allocation3 + $0x90] sm:$0xff]
    %v141 = vld [vmem:[#allocation3 + $0x98] sm:$0xf]
    %v142 = vld [vmem:[#allocation3 + $0x9c] sm:$0xff]
    %v143 = vld [vmem:[#allocation3 + $0xa4] sm:$0xf]
    %v144 = vld [vmem:[#allocation3 + $0xa8] sm:$0xff]
    %v145 = vld [vmem:[#allocation3 + $0xb0] sm:$0xf]
    %v146 = vld [vmem:[#allocation3 + $0xb4] sm:$0xff]
    %v147 = vld [vmem:[#allocation3 + $0xbc] sm:$0xf]
    %v148 = vld [vmem:[#allocation3 + $0xc0] sm:$0xff]
    %v149 = vld [vmem:[#allocation3 + $0xc8] sm:$0xf]
    %v150 = vld [vmem:[#allocation3 + $0xcc] sm:$0xff]
    %v151 = vld [vmem:[#allocation3 + $0xd4] sm:$0xf]
    %v152 = vld [vmem:[#allocation3 + $0xd8] sm:$0xff]
    %v153 = vld [vmem:[#allocation3 + $0xe0] sm:$0xf]
    %v154 = vld [vmem:[#allocation3 + $0xe4] sm:$0xff]
    %v155 = vld [vmem:[#allocation3 + $0xec] sm:$0xf]
    %v156 = vld [vmem:[#allocation3 + $0xf0] sm:$0xff]
    %v157 = vld [vmem:[#allocation3 + $0xf8] sm:$0xf]
    %v158 = vld [vmem:[#allocation3 + $0xfc] sm:$0xff]
    %v159 = vld [vmem:[#allocation3 + $0x104] sm:$0xf]
    %v160 = vld [vmem:[#allocation3 + $0x108] sm:$0xff]
    %v161 = vld [vmem:[#allocation3 + $0x110] sm:$0xf]
    %v162 = vld [vmem:[#allocation3 + $0x114] sm:$0xff]
    %v163 = vld [vmem:[#allocation3 + $0x11c] sm:$0xf]
    %v164 = vld [vmem:[#allocation3 + $0x120] sm:$0xff]
    %v165 = vld [vmem:[#allocation3 + $0x128] sm:$0xf]
    %v166 = vld [vmem:[#allocation3 + $0x12c] sm:$0xff]
    %v167 = vld [vmem:[#allocation3 + $0x134] sm:$0xf]
    %v168 = vld [vmem:[#allocation6] sm:$0xf]
    %v169 = vld [vmem:[#allocation6 + $0x4] sm:$0xf]
    %v170 = vld [vmem:[#allocation6 + $0x8] sm:$0xf]
    %v171 = vld [vmem:[#allocation6 + $0xc] sm:$0xf]
    %v172 = vld [vmem:[#allocation6 + $0x10] sm:$0xf]
    %v173 = vld [vmem:[#allocation6 + $0x14] sm:$0xf]
    %v174 = vld [vmem:[#allocation6 + $0x18] sm:$0xf]
    %v175 = vld [vmem:[#allocation6 + $0x1c] sm:$0xf]
    %v176 = vld [vmem:[#allocation6 + $0x20] sm:$0xf]
    %v177 = vld [vmem:[#allocation6 + $0x24] sm:$0xf]
    %v178 = vld [vmem:[#allocation6 + $0x28] sm:$0xf]
    %v179 = vld [vmem:[#allocation6 + $0x2c] sm:$0xf]
    %v180 = vld [vmem:[#allocation6 + $0x30] sm:$0xf]
    %v181 = vld [vmem:[#allocation6 + $0x34] sm:$0xf]
    %v182 = vld [vmem:[#allocation6 + $0x38] sm:$0xf]
    %v183 = vld [vmem:[#allocation6 + $0x3c] sm:$0xf]
    %v184 = vld [vmem:[#allocation6 + $0x40] sm:$0xf]
    %v185 = vld [vmem:[#allocation6 + $0x44] sm:$0xf]
    %v186 = vld [vmem:[#allocation6 + $0x48] sm:$0xf]
    %v187 = vld [vmem:[#allocation6 + $0x4c] sm:$0xf]
    %v188 = vld [vmem:[#allocation6 + $0x50] sm:$0xf]
    %v189 = vld [vmem:[#allocation6 + $0x54] sm:$0xf]
    %v190 = vld [vmem:[#allocation6 + $0x58] sm:$0xf]
    %v191 = vld [vmem:[#allocation6 + $0x5c] sm:$0xf]
    %v192 = vld [vmem:[#allocation6 + $0x60] sm:$0xf]
    %v193 = vld [vmem:[#allocation6 + $0x64] sm:$0xf]
    %v194 = vld [vmem:[#allocation6 + $0x68] sm:$0xf]
    %v195 = vld [vmem:[#allocation6 + $0x6c] sm:$0xf]
    %v196 = vld [vmem:[#allocation6 + $0x70] sm:$0xf]
    %v197 = vld [vmem:[#allocation6 + $0x74] sm:$0xf]
    %v198 = vld [vmem:[#allocation6 + $0x78] sm:$0xf]
    %v199 = vld [vmem:[#allocation6 + $0x7c] sm:$0xf]
    %v200 = vld [vmem:[#allocation6 + $0x80] sm:$0xf]
    %v201 = vld [vmem:[#allocation6 + $0x84] sm:$0xf]
    %v202 = vld [vmem:[#allocation6 + $0x88] sm:$0xf]
    %v203 = vld [vmem:[#allocation6 + $0x8c] sm:$0xf]
    %v204 = vld [vmem:[#allocation6 + $0x90] sm:$0xf]
    %v205 = vld [vmem:[#allocation6 + $0x94] sm:$0xf]
    %v206 = vld [vmem:[#allocation6 + $0x98] sm:$0xf]
    %v207 = vld [vmem:[#allocation6 + $0x9c] sm:$0xf]
    %v208 = vld [vmem:[#allocation6 + $0xa0] sm:$0xf]
    %v209 = vld [vmem:[#allocation6 + $0xa4] sm:$0xf]
    %v210 = vld [vmem:[#allocation6 + $0xa8] sm:$0xf]
    %v211 = vld [vmem:[#allocation6 + $0xac] sm:$0xf]
    %v212 = vld [vmem:[#allocation6 + $0xb0] sm:$0xf]
    %v213 = vld [vmem:[#allocation6 + $0xb4] sm:$0xf]
    %v214 = vld [vmem:[#allocation6 + $0xb8] sm:$0xf]
    %v215 = vld [vmem:[#allocation6 + $0xbc] sm:$0xf]
    %v268 = vunpack.c.l.b16 %v116
    %v269 = vunpack.c.h.b16 %v116
    %v270 = vunpack.c.l.b16 %v117
    %v271 = vunpack.c.l.b16 %v118
    %v272 = vunpack.c.h.b16 %v118
    %v273 = vunpack.c.l.b16 %v119
    %v274 = vunpack.c.l.b16 %v120
    %v275 = vunpack.c.h.b16 %v120
    %v276 = vunpack.c.l.b16 %v121
    %v277 = vunpack.c.l.b16 %v122
    %v278 = vunpack.c.h.b16 %v122
    %v279 = vunpack.c.l.b16 %v123
    %v280 = vunpack.c.l.b16 %v124
    %v281 = vunpack.c.h.b16 %v124
    %v282 = vunpack.c.l.b16 %v125
    %v283 = vunpack.c.l.b16 %v126
    %v284 = vunpack.c.h.b16 %v126
    %v285 = vunpack.c.l.b16 %v127
    %v286 = vunpack.c.l.b16 %v128
    %v287 = vunpack.c.h.b16 %v128
    %v288 = vunpack.c.l.b16 %v129
    %v289 = vunpack.c.l.b16 %v130
    %v290 = vunpack.c.h.b16 %v130
    %v291 = vunpack.c.l.b16 %v131
    %v292 = vunpack.c.l.b16 %v132
    %v293 = vunpack.c.h.b16 %v132
    %v294 = vunpack.c.l.b16 %v133
    %v295 = vunpack.c.l.b16 %v134
    %v296 = vunpack.c.h.b16 %v134
    %v297 = vunpack.c.l.b16 %v135
    %v298 = vunpack.c.l.b16 %v136
    %v299 = vunpack.c.h.b16 %v136
    %v300 = vunpack.c.l.b16 %v137
    %v301 = vunpack.c.l.b16 %v138
    %v302 = vunpack.c.h.b16 %v138
    %v303 = vunpack.c.l.b16 %v139
    %v304 = vunpack.c.l.b16 %v140
    %v305 = vunpack.c.h.b16 %v140
    %v306 = vunpack.c.l.b16 %v141
    %v307 = vunpack.c.l.b16 %v142
    %v308 = vunpack.c.h.b16 %v142
    %v309 = vunpack.c.l.b16 %v143
    %v310 = vunpack.c.l.b16 %v144
    %v311 = vunpack.c.h.b16 %v144
    %v312 = vunpack.c.l.b16 %v145
    %v313 = vunpack.c.l.b16 %v146
    %v314 = vunpack.c.h.b16 %v146
    %v315 = vunpack.c.l.b16 %v147
    %v316 = vunpack.c.l.b16 %v148
    %v317 = vunpack.c.h.b16 %v148
    %v318 = vunpack.c.l.b16 %v149
    %v319 = vunpack.c.l.b16 %v150
    %v320 = vunpack.c.h.b16 %v150
    %v321 = vunpack.c.l.b16 %v151
    %v322 = vunpack.c.l.b16 %v152
    %v323 = vunpack.c.h.b16 %v152
    %v324 = vunpack.c.l.b16 %v153
    %v325 = vunpack.c.l.b16 %v154
    %v326 = vunpack.c.h.b16 %v154
    %v327 = vunpack.c.l.b16 %v155
    %v328 = vunpack.c.l.b16 %v156
    %v329 = vunpack.c.h.b16 %v156
    %v330 = vunpack.c.l.b16 %v157
    %v331 = vunpack.c.l.b16 %v158
    %v332 = vunpack.c.h.b16 %v158
    %v333 = vunpack.c.l.b16 %v159
    %v334 = vunpack.c.l.b16 %v160
    %v335 = vunpack.c.h.b16 %v160
    %v336 = vunpack.c.l.b16 %v161
    %v337 = vunpack.c.l.b16 %v162
    %v338 = vunpack.c.h.b16 %v162
    %v339 = vunpack.c.l.b16 %v163
    %v340 = vunpack.c.l.b16 %v164
    %v341 = vunpack.c.h.b16 %v164
    %v342 = vunpack.c.l.b16 %v165
    %v343 = vunpack.c.l.b16 %v166
    %v344 = vunpack.c.h.b16 %v166
    %v345 = vunpack.c.l.b16 %v167
    %v346 = vpack.c.b16 %v271, %v268
    %v347 = vpack.c.b16 %v272, %v269
    %v348 = vpack.c.b16 %v273, %v270
    %v349 = vpack.c.b16 %v277, %v274
    %v350 = vpack.c.b16 %v278, %v275
    %v351 = vpack.c.b16 %v279, %v276
    %v352 = vpack.c.b16 %v283, %v280
    %v353 = vpack.c.b16 %v284, %v281
    %v354 = vpack.c.b16 %v285, %v282
    %v355 = vpack.c.b16 %v289, %v286
    %v356 = vpack.c.b16 %v290, %v287
    %v357 = vpack.c.b16 %v291, %v288
    %v358 = vpack.c.b16 %v295, %v292
    %v359 = vpack.c.b16 %v296, %v293
    %v360 = vpack.c.b16 %v297, %v294
    %v361 = vpack.c.b16 %v301, %v298
    %v362 = vpack.c.b16 %v302, %v299
    %v363 = vpack.c.b16 %v303, %v300
    %v364 = vpack.c.b16 %v307, %v304
    %v365 = vpack.c.b16 %v308, %v305
    %v366 = vpack.c.b16 %v309, %v306
    %v367 = vpack.c.b16 %v313, %v310
    %v368 = vpack.c.b16 %v314, %v311
    %v369 = vpack.c.b16 %v315, %v312
    %v370 = vpack.c.b16 %v319, %v316
    %v371 = vpack.c.b16 %v320, %v317
    %v372 = vpack.c.b16 %v321, %v318
    %v373 = vpack.c.b16 %v325, %v322
    %v374 = vpack.c.b16 %v326, %v323
    %v375 = vpack.c.b16 %v327, %v324
    %v376 = vpack.c.b16 %v331, %v328
    %v377 = vpack.c.b16 %v332, %v329
    %v378 = vpack.c.b16 %v333, %v330
    %v379 = vpack.c.b16 %v337, %v334
    %v380 = vpack.c.b16 %v338, %v335
    %v381 = vpack.c.b16 %v339, %v336
    %v382 = vpack.c.b16 %v343, %v340
    %v383 = vpack.c.b16 %v344, %v341
    %v384 = vpack.c.b16 %v345, %v342
    %v472 = vunpack.c.l.b16 %v168
    %v473 = vunpack.c.l.b16 %v169
    %v474 = vunpack.c.l.b16 %v170
    %v475 = vunpack.c.l.b16 %v171
    %v476 = vunpack.c.l.b16 %v172
    %v477 = vunpack.c.l.b16 %v173
    %v478 = vunpack.c.l.b16 %v174
    %v479 = vunpack.c.l.b16 %v175
    %v480 = vunpack.c.l.b16 %v176
    %v481 = vunpack.c.l.b16 %v177
    %v482 = vunpack.c.l.b16 %v178
    %v483 = vunpack.c.l.b16 %v179
    %v484 = vunpack.c.l.b16 %v180
    %v485 = vunpack.c.l.b16 %v181
    %v486 = vunpack.c.l.b16 %v182
    %v487 = vunpack.c.l.b16 %v183
    %v488 = vunpack.c.l.b16 %v184
    %v489 = vunpack.c.l.b16 %v185
    %v490 = vunpack.c.l.b16 %v186
    %v491 = vunpack.c.l.b16 %v187
    %v492 = vunpack.c.l.b16 %v188
    %v493 = vunpack.c.l.b16 %v189
    %v494 = vunpack.c.l.b16 %v190
    %v495 = vunpack.c.l.b16 %v191
    %v496 = vunpack.c.l.b16 %v192
    %v497 = vunpack.c.l.b16 %v193
    %v498 = vunpack.c.l.b16 %v194
    %v499 = vunpack.c.l.b16 %v195
    %v500 = vunpack.c.l.b16 %v196
    %v501 = vunpack.c.l.b16 %v197
    %v502 = vunpack.c.l.b16 %v198
    %v503 = vunpack.c.l.b16 %v199
    %v504 = vunpack.c.l.b16 %v200
    %v505 = vunpack.c.l.b16 %v201
    %v506 = vunpack.c.l.b16 %v202
    %v507 = vunpack.c.l.b16 %v203
    %v508 = vunpack.c.l.b16 %v204
    %v509 = vunpack.c.l.b16 %v205
    %v510 = vunpack.c.l.b16 %v206
    %v511 = vunpack.c.l.b16 %v207
    %v512 = vunpack.c.l.b16 %v208
    %v513 = vunpack.c.l.b16 %v209
    %v514 = vunpack.c.l.b16 %v210
    %v515 = vunpack.c.l.b16 %v211
    %v516 = vunpack.c.l.b16 %v212
    %v517 = vunpack.c.l.b16 %v213
    %v518 = vunpack.c.l.b16 %v214
    %v519 = vunpack.c.l.b16 %v215
    %v520 = vpack.c.b16 %v473, %v472
    %v521 = vpack.c.b16 %v475, %v474
    %v522 = vpack.c.b16 %v477, %v476
    %v523 = vpack.c.b16 %v479, %v478
    %v524 = vpack.c.b16 %v481, %v480
    %v525 = vpack.c.b16 %v483, %v482
    %v526 = vpack.c.b16 %v485, %v484
    %v527 = vpack.c.b16 %v487, %v486
    %v528 = vpack.c.b16 %v489, %v488
    %v529 = vpack.c.b16 %v491, %v490
    %v530 = vpack.c.b16 %v493, %v492
    %v531 = vpack.c.b16 %v495, %v494
    %v532 = vpack.c.b16 %v497, %v496
    %v533 = vpack.c.b16 %v499, %v498
    %v534 = vpack.c.b16 %v501, %v500
    %v535 = vpack.c.b16 %v503, %v502
    %v536 = vpack.c.b16 %v505, %v504
    %v537 = vpack.c.b16 %v507, %v506
    %v538 = vpack.c.b16 %v509, %v508
    %v539 = vpack.c.b16 %v511, %v510
    %v540 = vpack.c.b16 %v513, %v512
    %v541 = vpack.c.b16 %v515, %v514
    %v542 = vpack.c.b16 %v517, %v516
    %v543 = vpack.c.b16 %v519, %v518
    %568 = vmatprep.subr.bf16.mxu0 0
    %569 = vmatpush1.bf16.msra.mxu0 %v527
    %570 = vmatprep.subr.bf16.mxu0 0
    %571 = vmatpush1.bf16.msra.mxu0 %v526
    %572 = vmatprep.subr.bf16.mxu0 0
    %573 = vmatpush1.bf16.msra.mxu0 %v525
    %574 = vmatprep.subr.bf16.mxu0 0
    %575 = vmatpush1.bf16.msra.mxu0 %v524
    %576 = vmatprep.subr.bf16.mxu0 0
    %577 = vmatpush1.bf16.msra.mxu0 %v523
    %578 = vmatprep.subr.bf16.mxu0 0
    %579 = vmatpush1.bf16.msra.mxu0 %v522
    %580 = vmatprep.subr.bf16.mxu0 0
    %581 = vmatpush1.bf16.msra.mxu0 %v521
    %582 = vmatprep.subr.bf16.mxu0 0
    %583 = vmatpush1.bf16.msra.mxu0 %v520
    %584 = vmatprep.subr.bf16.mxu0 0
    %585 = vmatpush2.bf16.msra.mxu0 %v535
    %586 = vmatprep.subr.bf16.mxu0 0
    %587 = vmatpush2.bf16.msra.mxu0 %v534
    %588 = vmatprep.subr.bf16.mxu0 0
    %589 = vmatpush2.bf16.msra.mxu0 %v533
    %590 = vmatprep.subr.bf16.mxu0 0
    %591 = vmatpush2.bf16.msra.mxu0 %v532
    %592 = vmatprep.subr.bf16.mxu0 0
    %593 = vmatpush2.bf16.msra.mxu0 %v531
    %594 = vmatprep.subr.bf16.mxu0 0
    %595 = vmatpush2.bf16.msra.mxu0 %v530
    %596 = vmatprep.subr.bf16.mxu0 0
    %597 = vmatpush2.bf16.msra.mxu0 %v529
    %598 = vmatprep.subr.bf16.mxu0 0
    %599 = vmatpush2.bf16.msra.mxu0 %v528
    %600 = vmatprep.mubr.bf16.mxu0 %v347
    %601 = vmatmul.mubr.bf16.gmra.mxu0 %v346
    %v602 = vpop.f32.mrf.mxu0
    %v603 = vadd.f32 0.0, %v602
    %v604 = vpop.f32.mrf.mxu0
    %v605 = vpop.f32.mrf.mxu0
    %v606 = vadd.f32 0.0, %v605
    %v607 = vpop.f32.mrf.mxu0
    %608 = vmatprep.mubr.bf16.mxu0 %v350
    %609 = vmatmul.mubr.bf16.gmra.mxu0 %v349
    %v610 = vpop.f32.mrf.mxu0
    %v611 = vadd.f32 0.0, %v610
    %v612 = vpop.f32.mrf.mxu0
    %v613 = vpop.f32.mrf.mxu0
    %v614 = vadd.f32 0.0, %v613
    %v615 = vpop.f32.mrf.mxu0
    %616 = vmatprep.mubr.bf16.mxu0 %v353
    %617 = vmatmul.mubr.bf16.gmra.mxu0 %v352
    %v618 = vpop.f32.mrf.mxu0
    %v619 = vadd.f32 0.0, %v618
    %v620 = vpop.f32.mrf.mxu0
    %v621 = vpop.f32.mrf.mxu0
    %v622 = vadd.f32 0.0, %v621
    %v623 = vpop.f32.mrf.mxu0
    %624 = vmatprep.mubr.bf16.mxu0 %v356
    %625 = vmatmul.mubr.bf16.gmra.mxu0 %v355
    %v626 = vpop.f32.mrf.mxu0
    %v627 = vadd.f32 0.0, %v626
    %v628 = vpop.f32.mrf.mxu0
    %v629 = vpop.f32.mrf.mxu0
    %v630 = vadd.f32 0.0, %v629
    %v631 = vpop.f32.mrf.mxu0
    %632 = vmatprep.mubr.bf16.mxu0 %v359
    %633 = vmatmul.mubr.bf16.gmra.mxu0 %v358
    %v634 = vpop.f32.mrf.mxu0
    %v635 = vadd.f32 0.0, %v634
    %v636 = vpop.f32.mrf.mxu0
    %v637 = vpop.f32.mrf.mxu0
    %v638 = vadd.f32 0.0, %v637
    %v639 = vpop.f32.mrf.mxu0
    %640 = vmatprep.mubr.bf16.mxu0 %v362
    %641 = vmatmul.mubr.bf16.gmra.mxu0 %v361
    %v642 = vpop.f32.mrf.mxu0
    %v643 = vadd.f32 0.0, %v642
    %v644 = vpop.f32.mrf.mxu0
    %v645 = vpop.f32.mrf.mxu0
    %v646 = vadd.f32 0.0, %v645
    %v647 = vpop.f32.mrf.mxu0
    %648 = vmatprep.mubr.bf16.mxu0 %v365
    %649 = vmatmul.mubr.bf16.gmra.mxu0 %v364
    %v650 = vpop.f32.mrf.mxu0
    %v651 = vadd.f32 0.0, %v650
    %v652 = vpop.f32.mrf.mxu0
    %v653 = vpop.f32.mrf.mxu0
    %v654 = vadd.f32 0.0, %v653
    %v655 = vpop.f32.mrf.mxu0
    %656 = vmatprep.mubr.bf16.mxu0 %v368
    %657 = vmatmul.mubr.bf16.gmra.mxu0 %v367
    %v658 = vpop.f32.mrf.mxu0
    %v659 = vadd.f32 0.0, %v658
    %v660 = vpop.f32.mrf.mxu0
    %v661 = vpop.f32.mrf.mxu0
    %v662 = vadd.f32 0.0, %v661
    %v663 = vpop.f32.mrf.mxu0
    %664 = vmatprep.mubr.bf16.mxu0 %v371
    %665 = vmatmul.mubr.bf16.gmra.mxu0 %v370
    %v666 = vpop.f32.mrf.mxu0
    %v667 = vadd.f32 0.0, %v666
    %v668 = vpop.f32.mrf.mxu0
    %v669 = vpop.f32.mrf.mxu0
    %v670 = vadd.f32 0.0, %v669
    %v671 = vpop.f32.mrf.mxu0
    %672 = vmatprep.mubr.bf16.mxu0 %v374
    %673 = vmatmul.mubr.bf16.gmra.mxu0 %v373
    %v674 = vpop.f32.mrf.mxu0
    %v675 = vadd.f32 0.0, %v674
    %v676 = vpop.f32.mrf.mxu0
    %v677 = vpop.f32.mrf.mxu0
    %v678 = vadd.f32 0.0, %v677
    %v679 = vpop.f32.mrf.mxu0
    %680 = vmatprep.mubr.bf16.mxu0 %v377
    %681 = vmatmul.mubr.bf16.gmra.mxu0 %v376
    %v682 = vpop.f32.mrf.mxu0
    %v683 = vadd.f32 0.0, %v682
    %v684 = vpop.f32.mrf.mxu0
    %v685 = vpop.f32.mrf.mxu0
    %v686 = vadd.f32 0.0, %v685
    %v687 = vpop.f32.mrf.mxu0
    %688 = vmatprep.mubr.bf16.mxu0 %v380
    %689 = vmatmul.mubr.bf16.gmra.mxu0 %v379
    %v690 = vpop.f32.mrf.mxu0
    %v691 = vadd.f32 0.0, %v690
    %v692 = vpop.f32.mrf.mxu0
    %v693 = vpop.f32.mrf.mxu0
    %v694 = vadd.f32 0.0, %v693
    %v695 = vpop.f32.mrf.mxu0
    %696 = vmatprep.mubr.bf16.mxu0 %v383
    %697 = vmatmul.mubr.bf16.gmra.mxu0 %v382
    %v698 = vpop.f32.mrf.mxu0
    %v699 = vadd.f32 0.0, %v698
    %v700 = vpop.f32.mrf.mxu0
    %v701 = vpop.f32.mrf.mxu0
    %v702 = vadd.f32 0.0, %v701
    %v703 = vpop.f32.mrf.mxu0
    %704 = vdwg.mxu0
    %705 = vmatprep.subr.bf16.mxu0 0
    %706 = vmatpush1.bf16.msra.mxu0 %v543
    %707 = vmatprep.subr.bf16.mxu0 0
    %708 = vmatpush1.bf16.msra.mxu0 %v542
    %709 = vmatprep.subr.bf16.mxu0 0
    %710 = vmatpush1.bf16.msra.mxu0 %v541
    %711 = vmatprep.subr.bf16.mxu0 0
    %712 = vmatpush1.bf16.msra.mxu0 %v540
    %713 = vmatprep.subr.bf16.mxu0 0
    %714 = vmatpush1.bf16.msra.mxu0 %v539
    %715 = vmatprep.subr.bf16.mxu0 0
    %716 = vmatpush1.bf16.msra.mxu0 %v538
    %717 = vmatprep.subr.bf16.mxu0 0
    %718 = vmatpush1.bf16.msra.mxu0 %v537
    %719 = vmatprep.subr.bf16.mxu0 0
    %720 = vmatpush1.bf16.msra.mxu0 %v536
    %721 = vmatprep.subr.bf16.mxu0 0
    %722 = vmatpush2.bf16.msra.mxu0 0
    %723 = vmatprep.subr.bf16.mxu0 0
    %724 = vmatpush2.bf16.msra.mxu0 0
    %725 = vmatprep.subr.bf16.mxu0 0
    %726 = vmatpush2.bf16.msra.mxu0 0
    %727 = vmatprep.subr.bf16.mxu0 0
    %728 = vmatpush2.bf16.msra.mxu0 0
    %729 = vmatprep.subr.bf16.mxu0 0
    %730 = vmatpush2.bf16.msra.mxu0 0
    %731 = vmatprep.subr.bf16.mxu0 0
    %732 = vmatpush2.bf16.msra.mxu0 0
    %733 = vmatprep.subr.bf16.mxu0 0
    %734 = vmatpush2.bf16.msra.mxu0 0
    %735 = vmatprep.subr.bf16.mxu0 0
    %736 = vmatpush2.bf16.msra.mxu0 0
    %737 = vmatprep.mubr.bf16.mxu0 0
    %738 = vmatmul.mubr.bf16.gmra.mxu0 %v348
    %v739 = vpop.f32.mrf.mxu0
    %v740 = vadd.f32 %v603, %v739
    %v741 = vpop.f32.mrf.mxu0
    %v742 = vpop.f32.mrf.mxu0
    %v743 = vadd.f32 %v606, %v742
    %v744 = vpop.f32.mrf.mxu0
    %745 = vmatprep.mubr.bf16.mxu0 0
    %746 = vmatmul.mubr.bf16.gmra.mxu0 %v351
    %v747 = vpop.f32.mrf.mxu0
    %v748 = vadd.f32 %v611, %v747
    %v749 = vpop.f32.mrf.mxu0
    %v750 = vpop.f32.mrf.mxu0
    %v751 = vadd.f32 %v614, %v750
    %v752 = vpop.f32.mrf.mxu0
    %753 = vmatprep.mubr.bf16.mxu0 0
    %754 = vmatmul.mubr.bf16.gmra.mxu0 %v354
    %v755 = vpop.f32.mrf.mxu0
    %v756 = vadd.f32 %v619, %v755
    %v757 = vpop.f32.mrf.mxu0
    %v758 = vpop.f32.mrf.mxu0
    %v759 = vadd.f32 %v622, %v758
    %v760 = vpop.f32.mrf.mxu0
    %761 = vmatprep.mubr.bf16.mxu0 0
    %762 = vmatmul.mubr.bf16.gmra.mxu0 %v357
    %v763 = vpop.f32.mrf.mxu0
    %v764 = vadd.f32 %v627, %v763
    %v765 = vpop.f32.mrf.mxu0
    %v766 = vpop.f32.mrf.mxu0
    %v767 = vadd.f32 %v630, %v766
    %v768 = vpop.f32.mrf.mxu0
    %769 = vmatprep.mubr.bf16.mxu0 0
    %770 = vmatmul.mubr.bf16.gmra.mxu0 %v360
    %v771 = vpop.f32.mrf.mxu0
    %v772 = vadd.f32 %v635, %v771
    %v773 = vpop.f32.mrf.mxu0
    %v774 = vpop.f32.mrf.mxu0
    %v775 = vadd.f32 %v638, %v774
    %v776 = vpop.f32.mrf.mxu0
    %777 = vmatprep.mubr.bf16.mxu0 0
    %778 = vmatmul.mubr.bf16.gmra.mxu0 %v363
    %v779 = vpop.f32.mrf.mxu0
    %v780 = vadd.f32 %v643, %v779
    %v781 = vpop.f32.mrf.mxu0
    %v782 = vpop.f32.mrf.mxu0
    %v783 = vadd.f32 %v646, %v782
    %v784 = vpop.f32.mrf.mxu0
    %785 = vmatprep.mubr.bf16.mxu0 0
    %786 = vmatmul.mubr.bf16.gmra.mxu0 %v366
    %v787 = vpop.f32.mrf.mxu0
    %v788 = vadd.f32 %v651, %v787
    %v789 = vpop.f32.mrf.mxu0
    %v790 = vpop.f32.mrf.mxu0
    %v791 = vadd.f32 %v654, %v790
    %v792 = vpop.f32.mrf.mxu0
    %793 = vmatprep.mubr.bf16.mxu0 0
    %794 = vmatmul.mubr.bf16.gmra.mxu0 %v369
    %v795 = vpop.f32.mrf.mxu0
    %v796 = vadd.f32 %v659, %v795
    %v797 = vpop.f32.mrf.mxu0
    %v798 = vpop.f32.mrf.mxu0
    %v799 = vadd.f32 %v662, %v798
    %v800 = vpop.f32.mrf.mxu0
    %801 = vmatprep.mubr.bf16.mxu0 0
    %802 = vmatmul.mubr.bf16.gmra.mxu0 %v372
    %v803 = vpop.f32.mrf.mxu0
    %v804 = vadd.f32 %v667, %v803
    %v805 = vpop.f32.mrf.mxu0
    %v806 = vpop.f32.mrf.mxu0
    %v807 = vadd.f32 %v670, %v806
    %v808 = vpop.f32.mrf.mxu0
    %809 = vmatprep.mubr.bf16.mxu0 0
    %810 = vmatmul.mubr.bf16.gmra.mxu0 %v375
    %v811 = vpop.f32.mrf.mxu0
    %v812 = vadd.f32 %v675, %v811
    %v813 = vpop.f32.mrf.mxu0
    %v814 = vpop.f32.mrf.mxu0
    %v815 = vadd.f32 %v678, %v814
    %v816 = vpop.f32.mrf.mxu0
    %817 = vmatprep.mubr.bf16.mxu0 0
    %818 = vmatmul.mubr.bf16.gmra.mxu0 %v378
    %v819 = vpop.f32.mrf.mxu0
    %v820 = vadd.f32 %v683, %v819
    %v821 = vpop.f32.mrf.mxu0
    %v822 = vpop.f32.mrf.mxu0
    %v823 = vadd.f32 %v686, %v822
    %v824 = vpop.f32.mrf.mxu0
    %825 = vmatprep.mubr.bf16.mxu0 0
    %826 = vmatmul.mubr.bf16.gmra.mxu0 %v381
    %v827 = vpop.f32.mrf.mxu0
    %v828 = vadd.f32 %v691, %v827
    %v829 = vpop.f32.mrf.mxu0
    %v830 = vpop.f32.mrf.mxu0
    %v831 = vadd.f32 %v694, %v830
    %v832 = vpop.f32.mrf.mxu0
    %833 = vmatprep.mubr.bf16.mxu0 0
    %834 = vmatmul.mubr.bf16.gmra.mxu0 %v384
    %v835 = vpop.f32.mrf.mxu0
    %v836 = vadd.f32 %v699, %v835
    %v837 = vpop.f32.mrf.mxu0
    %v838 = vpop.f32.mrf.mxu0
    %v839 = vadd.f32 %v702, %v838
    %v840 = vpop.f32.mrf.mxu0
    %841 = vdwg.mxu0
    %v842 = vadd.f32 %v90, %v740
    %v843 = vadd.f32 %v91, %v743
    %v844 = vadd.f32 %v92, %v748
    %v845 = vadd.f32 %v93, %v751
    %v846 = vadd.f32 %v94, %v756
    %v847 = vadd.f32 %v95, %v759
    %v848 = vadd.f32 %v96, %v764
    %v849 = vadd.f32 %v97, %v767
    %v850 = vadd.f32 %v98, %v772
    %v851 = vadd.f32 %v99, %v775
    %v852 = vadd.f32 %v100, %v780
    %v853 = vadd.f32 %v101, %v783
    %v854 = vadd.f32 %v102, %v788
    %v855 = vadd.f32 %v103, %v791
    %v856 = vadd.f32 %v104, %v796
    %v857 = vadd.f32 %v105, %v799
    %v858 = vadd.f32 %v106, %v804
    %v859 = vadd.f32 %v107, %v807
    %v860 = vadd.f32 %v108, %v812
    %v861 = vadd.f32 %v109, %v815
    %v862 = vadd.f32 %v110, %v820
    %v863 = vadd.f32 %v111, %v823
    %v864 = vadd.f32 %v112, %v828
    %v865 = vadd.f32 %v113, %v831
    %v866 = vadd.f32 %v114, %v836
    %v867 = vadd.f32 %v115, %v839
    %868 = vst [vmem:[#allocation2] sm:$0xff] %v842
    %869 = vst [vmem:[#allocation2 + $0x8] sm:$0xff] %v843
    %870 = vst [vmem:[#allocation2 + $0x10] sm:$0xff] %v844
    %871 = vst [vmem:[#allocation2 + $0x18] sm:$0xff] %v845
    %872 = vst [vmem:[#allocation2 + $0x20] sm:$0xff] %v846
    %873 = vst [vmem:[#allocation2 + $0x28] sm:$0xff] %v847
    %874 = vst [vmem:[#allocation2 + $0x30] sm:$0xff] %v848
    %875 = vst [vmem:[#allocation2 + $0x38] sm:$0xff] %v849
    %876 = vst [vmem:[#allocation2 + $0x40] sm:$0xff] %v850
    %877 = vst [vmem:[#allocation2 + $0x48] sm:$0xff] %v851
    %878 = vst [vmem:[#allocation2 + $0x50] sm:$0xff] %v852
    %879 = vst [vmem:[#allocation2 + $0x58] sm:$0xff] %v853
    %880 = vst [vmem:[#allocation2 + $0x60] sm:$0xff] %v854
    %881 = vst [vmem:[#allocation2 + $0x68] sm:$0xff] %v855
    %882 = vst [vmem:[#allocation2 + $0x70] sm:$0xff] %v856
    %883 = vst [vmem:[#allocation2 + $0x78] sm:$0xff] %v857
    %884 = vst [vmem:[#allocation2 + $0x80] sm:$0xff] %v858
    %885 = vst [vmem:[#allocation2 + $0x88] sm:$0xff] %v859
    %886 = vst [vmem:[#allocation2 + $0x90] sm:$0xff] %v860
    %887 = vst [vmem:[#allocation2 + $0x98] sm:$0xff] %v861
    %888 = vst [vmem:[#allocation2 + $0xa0] sm:$0xff] %v862
    %889 = vst [vmem:[#allocation2 + $0xa8] sm:$0xff] %v863
    %890 = vst [vmem:[#allocation2 + $0xb0] sm:$0xff] %v864
    %891 = vst [vmem:[#allocation2 + $0xb8] sm:$0xff] %v865
    %892 = vst [vmem:[#allocation2 + $0xc0] sm:$0xff] %v866
    %893 = vst [vmem:[#allocation2 + $0xc8] sm:$0xff] %v867
    // Predicated region
    $region34: #{tpu_custom_call.1} parent=1 // pred_check
      %p894 = pneg %p60
    $region35: #{tpu_custom_call.1} parent=1 // pred_check_branch
      %896 = sbr.rel (%p894) target = $region37
    $region36: #{tpu_custom_call.1} parent=1 // pred_region
      %v897 = vld [vmem:[#allocation2] sm:$0xff]
      %v898 = vld [vmem:[#allocation2 + $0x8] sm:$0xff]
      %v899 = vld [vmem:[#allocation2 + $0x10] sm:$0xff]
      %v900 = vld [vmem:[#allocation2 + $0x18] sm:$0xff]
      %v901 = vld [vmem:[#allocation2 + $0x20] sm:$0xff]
      %v902 = vld [vmem:[#allocation2 + $0x28] sm:$0xff]
      %v903 = vld [vmem:[#allocation2 + $0x30] sm:$0xff]
      %v904 = vld [vmem:[#allocation2 + $0x38] sm:$0xff]
      %v905 = vld [vmem:[#allocation2 + $0x40] sm:$0xff]
      %v906 = vld [vmem:[#allocation2 + $0x48] sm:$0xff]
      %v907 = vld [vmem:[#allocation2 + $0x50] sm:$0xff]
      %v908 = vld [vmem:[#allocation2 + $0x58] sm:$0xff]
      %v909 = vld [vmem:[#allocation2 + $0x60] sm:$0xff]
      %v910 = vld [vmem:[#allocation2 + $0x68] sm:$0xff]
      %v911 = vld [vmem:[#allocation2 + $0x70] sm:$0xff]
      %v912 = vld [vmem:[#allocation2 + $0x78] sm:$0xff]
      %v913 = vld [vmem:[#allocation2 + $0x80] sm:$0xff]
      %v914 = vld [vmem:[#allocation2 + $0x88] sm:$0xff]
      %v915 = vld [vmem:[#allocation2 + $0x90] sm:$0xff]
      %v916 = vld [vmem:[#allocation2 + $0x98] sm:$0xff]
      %v917 = vld [vmem:[#allocation2 + $0xa0] sm:$0xff]
      %v918 = vld [vmem:[#allocation2 + $0xa8] sm:$0xff]
      %v919 = vld [vmem:[#allocation2 + $0xb0] sm:$0xff]
      %v920 = vld [vmem:[#allocation2 + $0xb8] sm:$0xff]
      %v921 = vld [vmem:[#allocation2 + $0xc0] sm:$0xff]
      %v922 = vld [vmem:[#allocation2 + $0xc8] sm:$0xff]
      %v923 = vld [vmem:[%s2] sm:$0x1]
      %v925 = vlaneseq
      %v926 = vshrl.u32 %v925, 7
      %v927 = vsub.s32 0, %v926
      %v928 = vrot.slane %v923, %v927
      %v930 = vadd.f32 %v897, %v928
      %v931 = vadd.f32 %v898, %v928
      %v932 = vadd.f32 %v899, %v928
      %v933 = vadd.f32 %v900, %v928
      %v934 = vadd.f32 %v901, %v928
      %v935 = vadd.f32 %v902, %v928
      %v936 = vadd.f32 %v903, %v928
      %v937 = vadd.f32 %v904, %v928
      %v938 = vadd.f32 %v905, %v928
      %v939 = vadd.f32 %v906, %v928
      %v940 = vadd.f32 %v907, %v928
      %v941 = vadd.f32 %v908, %v928
      %v942 = vadd.f32 %v909, %v928
      %v943 = vadd.f32 %v910, %v928
      %v944 = vadd.f32 %v911, %v928
      %v945 = vadd.f32 %v912, %v928
      %v946 = vadd.f32 %v913, %v928
      %v947 = vadd.f32 %v914, %v928
      %v948 = vadd.f32 %v915, %v928
      %v949 = vadd.f32 %v916, %v928
      %v950 = vadd.f32 %v917, %v928
      %v951 = vadd.f32 %v918, %v928
      %v952 = vadd.f32 %v919, %v928
      %v953 = vadd.f32 %v920, %v928
      %v954 = vadd.f32 %v921, %v928
      %v955 = vadd.f32 %v922, %v928
      %vm956 = vcmp.ge.f32.partialorder %v930, 0.0
      %vm957 = vcmp.ge.f32.partialorder %v931, 0.0
      %vm958 = vcmp.ge.f32.partialorder %v932, 0.0
      %vm959 = vcmp.ge.f32.partialorder %v933, 0.0
      %vm960 = vcmp.ge.f32.partialorder %v934, 0.0
      %vm961 = vcmp.ge.f32.partialorder %v935, 0.0
      %vm962 = vcmp.ge.f32.partialorder %v936, 0.0
      %vm963 = vcmp.ge.f32.partialorder %v937, 0.0
      %vm964 = vcmp.ge.f32.partialorder %v938, 0.0
      %vm965 = vcmp.ge.f32.partialorder %v939, 0.0
      %vm966 = vcmp.ge.f32.partialorder %v940, 0.0
      %vm967 = vcmp.ge.f32.partialorder %v941, 0.0
      %vm968 = vcmp.ge.f32.partialorder %v942, 0.0
      %vm969 = vcmp.ge.f32.partialorder %v943, 0.0
      %vm970 = vcmp.ge.f32.partialorder %v944, 0.0
      %vm971 = vcmp.ge.f32.partialorder %v945, 0.0
      %vm972 = vcmp.ge.f32.partialorder %v946, 0.0
      %vm973 = vcmp.ge.f32.partialorder %v947, 0.0
      %vm974 = vcmp.ge.f32.partialorder %v948, 0.0
      %vm975 = vcmp.ge.f32.partialorder %v949, 0.0
      %vm976 = vcmp.ge.f32.partialorder %v950, 0.0
      %vm977 = vcmp.ge.f32.partialorder %v951, 0.0
      %vm978 = vcmp.ge.f32.partialorder %v952, 0.0
      %vm979 = vcmp.ge.f32.partialorder %v953, 0.0
      %vm980 = vcmp.ge.f32.partialorder %v954, 0.0
      %vm981 = vcmp.ge.f32.partialorder %v955, 0.0
      %v982 = vmul.f32 %v930, 0.01
      %v983 = vmul.f32 %v931, 0.01
      %v984 = vmul.f32 %v932, 0.01
      %v985 = vmul.f32 %v933, 0.01
      %v986 = vmul.f32 %v934, 0.01
      %v987 = vmul.f32 %v935, 0.01
      %v988 = vmul.f32 %v936, 0.01
      %v989 = vmul.f32 %v937, 0.01
      %v990 = vmul.f32 %v938, 0.01
      %v991 = vmul.f32 %v939, 0.01
      %v992 = vmul.f32 %v940, 0.01
      %v993 = vmul.f32 %v941, 0.01
      %v994 = vmul.f32 %v942, 0.01
      %v995 = vmul.f32 %v943, 0.01
      %v996 = vmul.f32 %v944, 0.01
      %v997 = vmul.f32 %v945, 0.01
      %v998 = vmul.f32 %v946, 0.01
      %v999 = vmul.f32 %v947, 0.01
      %v1000 = vmul.f32 %v948, 0.01
      %v1001 = vmul.f32 %v949, 0.01
      %v1002 = vmul.f32 %v950, 0.01
      %v1003 = vmul.f32 %v951, 0.01
      %v1004 = vmul.f32 %v952, 0.01
      %v1005 = vmul.f32 %v953, 0.01
      %v1006 = vmul.f32 %v954, 0.01
      %v1007 = vmul.f32 %v955, 0.01
      %v1008 = vsel %vm956, %v930, %v982
      %v1009 = vsel %vm957, %v931, %v983
      %v1010 = vsel %vm958, %v932, %v984
      %v1011 = vsel %vm959, %v933, %v985
      %v1012 = vsel %vm960, %v934, %v986
      %v1013 = vsel %vm961, %v935, %v987
      %v1014 = vsel %vm962, %v936, %v988
      %v1015 = vsel %vm963, %v937, %v989
      %v1016 = vsel %vm964, %v938, %v990
      %v1017 = vsel %vm965, %v939, %v991
      %v1018 = vsel %vm966, %v940, %v992
      %v1019 = vsel %vm967, %v941, %v993
      %v1020 = vsel %vm968, %v942, %v994
      %v1021 = vsel %vm969, %v943, %v995
      %v1022 = vsel %vm970, %v944, %v996
      %v1023 = vsel %vm971, %v945, %v997
      %v1024 = vsel %vm972, %v946, %v998
      %v1025 = vsel %vm973, %v947, %v999
      %v1026 = vsel %vm974, %v948, %v1000
      %v1027 = vsel %vm975, %v949, %v1001
      %v1028 = vsel %vm976, %v950, %v1002
      %v1029 = vsel %vm977, %v951, %v1003
      %v1030 = vsel %vm978, %v952, %v1004
      %v1031 = vsel %vm979, %v953, %v1005
      %v1032 = vsel %vm980, %v954, %v1006
      %v1033 = vsel %vm981, %v955, %v1007
      %v1034 = vld [vmem:[#allocation8] sm:$0xf]
      %v1035 = vld [vmem:[#allocation8 + $0x4] sm:$0xf]
      %v1036 = vld [vmem:[#allocation8 + $0x8] sm:$0xf]
      %v1037 = vld [vmem:[#allocation8 + $0xc] sm:$0xf]
      %v1038 = vld [vmem:[#allocation8 + $0x10] sm:$0xf]
      %v1039 = vld [vmem:[#allocation8 + $0x14] sm:$0xf]
      %v1040 = vld [vmem:[#allocation8 + $0x18] sm:$0xf]
      %v1041 = vld [vmem:[#allocation8 + $0x1c] sm:$0xf]
      %v1042 = vld [vmem:[#allocation8 + $0x20] sm:$0xf]
      %v1043 = vld [vmem:[#allocation8 + $0x24] sm:$0xf]
      %v1044 = vld [vmem:[#allocation8 + $0x28] sm:$0xf]
      %v1045 = vld [vmem:[#allocation8 + $0x2c] sm:$0xf]
      %v1046 = vld [vmem:[#allocation8 + $0x30] sm:$0xf]
      %v1047 = vld [vmem:[#allocation8 + $0x34] sm:$0xf]
      %v1048 = vld [vmem:[#allocation8 + $0x38] sm:$0xf]
      %v1049 = vld [vmem:[#allocation8 + $0x3c] sm:$0xf]
      %v1050 = vld [vmem:[#allocation8 + $0x40] sm:$0xf]
      %v1051 = vld [vmem:[#allocation8 + $0x44] sm:$0xf]
      %v1052 = vld [vmem:[#allocation8 + $0x48] sm:$0xf]
      %v1053 = vld [vmem:[#allocation8 + $0x4c] sm:$0xf]
      %v1054 = vld [vmem:[#allocation8 + $0x50] sm:$0xf]
      %v1055 = vld [vmem:[#allocation8 + $0x54] sm:$0xf]
      %v1056 = vld [vmem:[#allocation8 + $0x58] sm:$0xf]
      %v1057 = vld [vmem:[#allocation8 + $0x5c] sm:$0xf]
      %v1058 = vld [vmem:[#allocation8 + $0x60] sm:$0xf]
      %v1059 = vld [vmem:[#allocation8 + $0x64] sm:$0xf]
      %v1060 = vunpack.c.l.bf16 %v1034
      %v1061 = vunpack.c.l.bf16 %v1035
      %v1062 = vunpack.c.l.bf16 %v1036
      %v1063 = vunpack.c.l.bf16 %v1037
      %v1064 = vunpack.c.l.bf16 %v1038
      %v1065 = vunpack.c.l.bf16 %v1039
      %v1066 = vunpack.c.l.bf16 %v1040
      %v1067 = vunpack.c.l.bf16 %v1041
      %v1068 = vunpack.c.l.bf16 %v1042
      %v1069 = vunpack.c.l.bf16 %v1043
      %v1070 = vunpack.c.l.bf16 %v1044
      %v1071 = vunpack.c.l.bf16 %v1045
      %v1072 = vunpack.c.l.bf16 %v1046
      %v1073 = vunpack.c.l.bf16 %v1047
      %v1074 = vunpack.c.l.bf16 %v1048
      %v1075 = vunpack.c.l.bf16 %v1049
      %v1076 = vunpack.c.l.bf16 %v1050
      %v1077 = vunpack.c.l.bf16 %v1051
      %v1078 = vunpack.c.l.bf16 %v1052
      %v1079 = vunpack.c.l.bf16 %v1053
      %v1080 = vunpack.c.l.bf16 %v1054
      %v1081 = vunpack.c.l.bf16 %v1055
      %v1082 = vunpack.c.l.bf16 %v1056
      %v1083 = vunpack.c.l.bf16 %v1057
      %v1084 = vunpack.c.l.bf16 %v1058
      %v1085 = vunpack.c.l.bf16 %v1059
      %v1086 = vadd.f32 %v1008, %v1060
      %v1087 = vadd.f32 %v1009, %v1061
      %v1088 = vadd.f32 %v1010, %v1062
      %v1089 = vadd.f32 %v1011, %v1063
      %v1090 = vadd.f32 %v1012, %v1064
      %v1091 = vadd.f32 %v1013, %v1065
      %v1092 = vadd.f32 %v1014, %v1066
      %v1093 = vadd.f32 %v1015, %v1067
      %v1094 = vadd.f32 %v1016, %v1068
      %v1095 = vadd.f32 %v1017, %v1069
      %v1096 = vadd.f32 %v1018, %v1070
      %v1097 = vadd.f32 %v1019, %v1071
      %v1098 = vadd.f32 %v1020, %v1072
      %v1099 = vadd.f32 %v1021, %v1073
      %v1100 = vadd.f32 %v1022, %v1074
      %v1101 = vadd.f32 %v1023, %v1075
      %v1102 = vadd.f32 %v1024, %v1076
      %v1103 = vadd.f32 %v1025, %v1077
      %v1104 = vadd.f32 %v1026, %v1078
      %v1105 = vadd.f32 %v1027, %v1079
      %v1106 = vadd.f32 %v1028, %v1080
      %v1107 = vadd.f32 %v1029, %v1081
      %v1108 = vadd.f32 %v1030, %v1082
      %v1109 = vadd.f32 %v1031, %v1083
      %v1110 = vadd.f32 %v1032, %v1084
      %v1111 = vadd.f32 %v1033, %v1085
      %1112 = vst [vmem:[#allocation9] sm:$0xff] %v1086
      %1113 = vst [vmem:[#allocation9 + $0x8] sm:$0xff] %v1087
      %1114 = vst [vmem:[#allocation9 + $0x10] sm:$0xff] %v1088
      %1115 = vst [vmem:[#allocation9 + $0x18] sm:$0xff] %v1089
      %1116 = vst [vmem:[#allocation9 + $0x20] sm:$0xff] %v1090
      %1117 = vst [vmem:[#allocation9 + $0x28] sm:$0xff] %v1091
      %1118 = vst [vmem:[#allocation9 + $0x30] sm:$0xff] %v1092
      %1119 = vst [vmem:[#allocation9 + $0x38] sm:$0xff] %v1093
      %1120 = vst [vmem:[#allocation9 + $0x40] sm:$0xff] %v1094
      %1121 = vst [vmem:[#allocation9 + $0x48] sm:$0xff] %v1095
      %1122 = vst [vmem:[#allocation9 + $0x50] sm:$0xff] %v1096
      %1123 = vst [vmem:[#allocation9 + $0x58] sm:$0xff] %v1097
      %1124 = vst [vmem:[#allocation9 + $0x60] sm:$0xff] %v1098
      %1125 = vst [vmem:[#allocation9 + $0x68] sm:$0xff] %v1099
      %1126 = vst [vmem:[#allocation9 + $0x70] sm:$0xff] %v1100
      %1127 = vst [vmem:[#allocation9 + $0x78] sm:$0xff] %v1101
      %1128 = vst [vmem:[#allocation9 + $0x80] sm:$0xff] %v1102
      %1129 = vst [vmem:[#allocation9 + $0x88] sm:$0xff] %v1103
      %1130 = vst [vmem:[#allocation9 + $0x90] sm:$0xff] %v1104
      %1131 = vst [vmem:[#allocation9 + $0x98] sm:$0xff] %v1105
      %1132 = vst [vmem:[#allocation9 + $0xa0] sm:$0xff] %v1106
      %1133 = vst [vmem:[#allocation9 + $0xa8] sm:$0xff] %v1107
      %1134 = vst [vmem:[#allocation9 + $0xb0] sm:$0xff] %v1108
      %1135 = vst [vmem:[#allocation9 + $0xb8] sm:$0xff] %v1109
      %1136 = vst [vmem:[#allocation9 + $0xc0] sm:$0xff] %v1110
      %1137 = vst [vmem:[#allocation9 + $0xc8] sm:$0xff] %v1111
    $region37: #{tpu_custom_call.1} parent=1 // pred_fallthru
      _
    // Predicated region
    $region38: #{tpu_custom_call.1} parent=1 // pred_check
      _
    $region39: #{tpu_custom_call.1} parent=1 // pred_check_branch
      %1139 = sbr.rel (0) target = $region41
    $region40: #{tpu_custom_call.1} parent=1 // pred_region
      %s1141 = ssub.s32 3328, 3200
      %1142 = vsyncadd [#allocation5], %s1141
      %s1143 = sshll.u32 [#allocation9], 4
      %s1144 = int_to_ptr.vmem [resolvable:$true] %s1143
      %1149 = dma.vmem_to_hbm [thread:$0]  %s1144, 3200, %s4, [#allocation5], 128, 128, 8
    $region41: #{tpu_custom_call.1} parent=1 // pred_fallthru
      _
    // Predicated region
    $region42: #{tpu_custom_call.1} parent=1 // pred_check
      _
    $region43: #{tpu_custom_call.1} parent=1 // pred_check_branch
      %1151 = sbr.rel (0) target = $region45
    $region44: #{tpu_custom_call.1} parent=1 // pred_region
      %1152 = dma.done [#allocation5], 3328
    $region45: #{tpu_custom_call.1} parent=1 // pred_fallthru
      _
    %1153 = vsyncpa [#allocation4], 1
    %1154 = vsyncpa [#allocation7], 1
    %1155 = vsyncpa [#allocation5], 1

</llo_original>
